<compile_context>
chip_gen: v5e
topology: v5e:2x2
jax: 0.10.0
libtpu: 0.0.40
codegen_flags: <defaults>
</compile_context>

<pallas_src>
import functools

import jax
import jax.numpy as jnp
from jax.experimental import pallas as pl
from jax.experimental.pallas import tpu as pltpu


def _round_up(a: int, m: int) -> int:
    return ((a + m - 1) // m) * m


def _vmem_capacity_bytes() -> int:
    try:
        return int(pltpu.get_tpu_info().vmem_capacity_bytes)
    except Exception:
        return 64 << 20  # conservative: v7x per-TensorCore VMEM


def _layernorm_finalize(y, params_ref, o_ref, eps, h_valid):
    """bias2 + LayerNorm over the real feature count.  One reduction pass.

    Padded columns of y are exactly zero (zero-padded weights/biases), so the
    plain sums of y and y*y are already the sums over the real features; no
    lane mask is needed.
    """
    p = params_ref[...].astype(jnp.float32)
    b2, gamma, beta = p[1:2, :], p[2:3, :], p[3:4, :]
    y = y + b2
    inv_h = 1.0 / float(h_valid)
    s1 = jnp.sum(y, axis=-1, keepdims=True)
    s2 = jnp.sum(y * y, axis=-1, keepdims=True)
    mean = s1 * inv_h
    var = jnp.maximum(s2 * inv_h - mean * mean, 0.0)
    out = (y - mean) * jax.lax.rsqrt(var + eps) * gamma + beta
    o_ref[...] = out.astype(o_ref.dtype)


def _kernel_resident(x_ref, w1_ref, w2_ref, params_ref, o_ref, *, eps, h_valid):
    # x_ref:      (tm, Dp)   native dtype (MXU operand)
    # w1_ref:     (Dp, Hp)   resident (single-buffered)
    # w2_ref:     (Hp, Hp)   resident (single-buffered)
    # params_ref: (4,  Hp)   rows: [b1, b2, gamma, beta] (f32)
    x = x_ref[...]
    b1 = params_ref[0:1, :].astype(jnp.float32)

    h = jnp.dot(x, w1_ref[...], preferred_element_type=jnp.float32) + b1
    h = h * jax.nn.sigmoid(h)                       # SiLU (EUP exp)
    # Dropout(p=0.0) == identity -> skipped.
    y = jnp.dot(h.astype(w2_ref.dtype), w2_ref[...],
                preferred_element_type=jnp.float32)
    _layernorm_finalize(y, params_ref, o_ref, eps, h_valid)


def _kernel_streamed(x_ref, w1_ref, w2_ref, b1_ref, params_ref, o_ref, acc_ref,
                     *, eps, h_valid):
    # Grid: (row_tiles, k_tiles).  k tiles the hidden dim: W1 columns / W2 rows.
    # x_ref:      (tm, Dp)          constant over k
    # w1_ref:     (Dp, tk)          column block k
    # w2_ref:     (tk, Hp)          row block k
    # b1_ref:     (1, tk)           bias-1 chunk k
    # params_ref: (4, Hp)           resident (b2/gamma/beta used at finalize)
    # acc_ref:    (tm, Hp) f32      accumulator scratch
    k = pl.program_id(1)

    @pl.when(k == 0)
    def _init():
        acc_ref[...] = jnp.zeros_like(acc_ref)

    x = x_ref[...]
    b1 = b1_ref[...].astype(jnp.float32)
    h = jnp.dot(x, w1_ref[...], preferred_element_type=jnp.float32) + b1
    h = h * jax.nn.sigmoid(h)                       # SiLU on this hidden chunk
    acc_ref[...] += jnp.dot(h.astype(w2_ref.dtype), w2_ref[...],
                            preferred_element_type=jnp.float32)

    @pl.when(k == pl.num_programs(1) - 1)
    def _done():
        _layernorm_finalize(acc_ref[...], params_ref, o_ref, eps, h_valid)


def vq_adaptor_forward(x, w1, b1, w2, b2, gamma, beta, *, eps, tm=None,
                       force_tk=None):
    """x: [..., D_in] -> [..., H].  Weights stored as [in, out]."""
    orig_shape = x.shape
    d_in = orig_shape[-1]
    h = w1.shape[1]
    x2d = x.reshape(-1, d_in)
    n = x2d.shape[0]

    lane = 128
    d_pad = _round_up(d_in, lane)
    h_pad = _round_up(h, lane)

    x_item = jnp.dtype(x.dtype).itemsize
    w_item = jnp.dtype(w1.dtype).itemsize
    out_item = x_item

    # ---- generation-aware VMEM budget & default row tile --------------------
    capacity = _vmem_capacity_bytes()
    budget = int(0.8 * capacity)            # headroom for compiler scratch
    if tm is None:
        tm = 512 if capacity >= (96 << 20) else 256   # v5e/v6e: 128 MiB; v7x: 64 MiB

    # ---- row tile ------------------------------------------------------------
    n8 = _round_up(max(n, 1), 8)
    tm_eff = max(8, min(_round_up(tm, 8), n8))
    if n8 > 8:
        # >=2 row steps so ("parallel",) can shard rows over v7x's 2 TensorCores.
        tm_eff = min(tm_eff, _round_up(pl.cdiv(n8, 2), 8))
    # Equalize the per-step row count so row padding is (near) minimal.
    steps = pl.cdiv(n8, tm_eff)
    tm_eff = _round_up(pl.cdiv(n8, steps), 8)

    # ---- hidden-dim tile (tk) selection --------------------------------------
    def vmem_need(tm_v, tk_v, w_bufs):
        k_tiles_v = h_pad // tk_v
        need = (2 * tm_v * d_pad * x_item          # x tile (double buffered)
                + w_bufs * d_pad * tk_v * w_item   # W1 block(s)
                + w_bufs * tk_v * h_pad * w_item   # W2 block(s)
                + 4 * h_pad * 4                    # fused params (single buffer)
                + 2 * tm_v * h_pad * out_item)     # out tile (double buffered)
        if k_tiles_v > 1:
            need += tm_v * h_pad * 4               # f32 accumulator scratch
            need += 2 * tk_v * 4                   # streamed b1 chunks
        return need

    m128 = h_pad // lane
    tk_candidates = sorted({lane * d for d in range(1, m128 + 1) if m128 % d == 0},
                           reverse=True)
    tm_candidates = [tm_eff] + [v for v in (512, 256, 128, 64, 32, 16, 8) if v < tm_eff]

    if force_tk is not None:
        assert force_tk % lane == 0 and h_pad % force_tk == 0
        tk = int(force_tk)
        tm_sel = tm_candidates[-1]
        for tm_try in tm_candidates:
            if vmem_need(tm_try, tk, 1 if h_pad == tk else 2) <= budget:
                tm_sel = tm_try
                break
    else:
        tm_sel, tk = tm_candidates[-1], lane
        found = False
        for tk_try in tk_candidates:               # prefer resident weights
            for tm_try in tm_candidates:           # then the biggest row tile
                if vmem_need(tm_try, tk_try, 1 if h_pad == tk_try else 2) <= budget:
                    tm_sel, tk = tm_try, tk_try
                    found = True
                    break
            if found:
                break

    tm_eff = tm_sel
    k_tiles = h_pad // tk
    n_pad = _round_up(n, tm_eff)
    n_tiles = n_pad // tm_eff

    # ---- operand prep (pads only when actually needed) -----------------------
    x_p = x2d
    if n_pad != n or d_pad != d_in:
        x_p = jnp.pad(x2d, ((0, n_pad - n), (0, d_pad - d_in)))
    w1_p = w1 if (d_pad == d_in and h_pad == h) else jnp.pad(
        w1, ((0, d_pad - d_in), (0, h_pad - h)))
    w2_p = w2 if h_pad == h else jnp.pad(w2, ((0, h_pad - h), (0, h_pad - h)))
    params = jnp.stack([b1, b2, gamma, beta]).astype(jnp.float32)
    params_p = params if h_pad == h else jnp.pad(params, ((0, 0), (0, h_pad - h)))
    b1_p = params_p[0:1, :]                        # only used by the streamed path

    # ---- compiler hints -------------------------------------------------------
    # Generous limit (assume double-buffered weights) so the Buffered(1)
    # fallback still fits; never clamp below the kernel's own requirement.
    need_limit = vmem_need(tm_eff, tk, 2)
    vmem_limit = int(min(capacity, max(need_limit + (2 << 20), 16 << 20)))

    w_reads = 1 if k_tiles == 1 else n_tiles       # streamed weights re-read per row tile
    cost = pl.CostEstimate(
        flops=int(2 * n_pad * h_pad * (d_pad + h_pad)),
        transcendentals=int(n_pad * h_pad),        # sigmoid exp
        bytes_accessed=int(
            n_pad * d_pad * x_item
            + w_reads * (d_pad * h_pad + h_pad * h_pad) * w_item
            + 4 * h_pad * 4
            + n_pad * h_pad * out_item),
    )

    def run(single_buffer_resident):
        res_mode = dict(pipeline_mode=pl.Buffered(1)) if single_buffer_resident else {}
        if k_tiles == 1:
            kernel = functools.partial(_kernel_resident, eps=float(eps), h_valid=int(h))
            call = pl.pallas_call(
                kernel,
                out_shape=jax.ShapeDtypeStruct((n_pad, h_pad), x.dtype),
                grid=(n_tiles,),
                in_specs=[
                    pl.BlockSpec((tm_eff, d_pad), lambda i: (i, 0)),             # x tile
                    pl.BlockSpec((d_pad, h_pad), lambda i: (0, 0), **res_mode),  # W1
                    pl.BlockSpec((h_pad, h_pad), lambda i: (0, 0), **res_mode),  # W2
                    pl.BlockSpec((4, h_pad), lambda i: (0, 0), **res_mode),      # params
                ],
                out_specs=pl.BlockSpec((tm_eff, h_pad), lambda i: (i, 0)),
                compiler_params=pltpu.CompilerParams(
                    dimension_semantics=("parallel",),
                    vmem_limit_bytes=vmem_limit,
                ),
                cost_estimate=cost,
            )
            return call(x_p, w1_p, w2_p, params_p)
        else:
            kernel = functools.partial(_kernel_streamed, eps=float(eps), h_valid=int(h))
            call = pl.pallas_call(
                kernel,
                out_shape=jax.ShapeDtypeStruct((n_pad, h_pad), x.dtype),
                grid=(n_tiles, k_tiles),
                in_specs=[
                    pl.BlockSpec((tm_eff, d_pad), lambda i, kk: (i, 0)),          # x tile
                    pl.BlockSpec((d_pad, tk), lambda i, kk: (0, kk)),             # W1 cols
                    pl.BlockSpec((tk, h_pad), lambda i, kk: (kk, 0)),             # W2 rows
                    pl.BlockSpec((1, tk), lambda i, kk: (0, kk)),                 # b1 chunk
                    pl.BlockSpec((4, h_pad), lambda i, kk: (0, 0), **res_mode),   # params
                ],
                out_specs=pl.BlockSpec((tm_eff, h_pad), lambda i, kk: (i, 0)),
                scratch_shapes=[pltpu.VMEM((tm_eff, h_pad), jnp.float32)],
                compiler_params=pltpu.CompilerParams(
                    dimension_semantics=("parallel", "arbitrary"),
                    vmem_limit_bytes=vmem_limit,
                ),
                cost_estimate=cost,
            )
            return call(x_p, w1_p, w2_p, b1_p, params_p)

    try:
        out_p = run(single_buffer_resident=True)
    except Exception:
        # Fallback if this Pallas version rejects pipeline_mode=pl.Buffered(1):
        # default double-buffered resident operands (correct, slightly more VMEM).
        out_p = run(single_buffer_resident=False)

    out = out_p if (n_pad == n and h_pad == h) else out_p[:n, :h]
    return out.reshape(orig_shape[:-1] + (h,))


if __name__ == "__main__":
    eps = 1e-6

    def ref_forward(x, w1, b1, w2, b2, gamma, beta):
        h = x @ w1 + b1
        h = h * jax.nn.sigmoid(h)
        y = h @ w2 + b2
        mu = jnp.mean(y, axis=-1, keepdims=True)
        var = jnp.mean((y - mu) ** 2, axis=-1, keepdims=True)
        return (y - mu) * jax.lax.rsqrt(var + eps) * gamma + beta

    def make_inputs(key, batch, seq, d_in, hidden):
        kx, kw1, kb1, kw2, kb2 = jax.random.split(key, 5)
        x = jax.random.normal(kx, (batch, seq, d_in), dtype=jnp.float32)
        w1 = jax.random.normal(kw1, (d_in, hidden), dtype=jnp.float32) * 0.05
        b1 = jax.random.normal(kb1, (hidden,), dtype=jnp.float32) * 0.01
        w2 = jax.random.normal(kw2, (hidden, hidden), dtype=jnp.float32) * 0.05
        b2 = jax.random.normal(kb2, (hidden,), dtype=jnp.float32) * 0.01
        gamma = jnp.ones((hidden,), dtype=jnp.float32)
        beta = jnp.zeros((hidden,), dtype=jnp.float32)
        return x, w1, b1, w2, b2, gamma, beta

    key = jax.random.PRNGKey(0)
    k1, k2 = jax.random.split(key)

    # Test 1: module-consistent small config (resident-weights path).
    batch, seq, d_in, hidden = 2, 8, 32, 32
    args1 = make_inputs(k1, batch, seq, d_in, hidden)
    out1 = vq_adaptor_forward(*args1, eps=eps)
    jax.block_until_ready(out1)
    exp1 = ref_forward(*args1)
    assert out1.shape == (batch, seq, hidden)
    assert jnp.allclose(out1, exp1, atol=2e-3, rtol=2e-3), "mismatch (resident path)"

    # Test 2: exercise the K-streamed W2 path (force tk=128 with hidden=256).
    args2 = make_inputs(k2, batch, seq, 64, 256)
    out2 = vq_adaptor_forward(*args2, eps=eps, force_tk=128)
    jax.block_until_ready(out2)
    exp2 = ref_forward(*args2)
    assert out2.shape == (batch, seq, 256)
    assert jnp.allclose(out2, exp2, atol=2e-3, rtol=2e-3), "mismatch (streamed path)"

    print("KERNEL_OK")
</pallas_src>

<mosaic_0001>
module attributes {stable_mosaic.version = 11 : i64} {
  func.func @_kernel_resident(%arg0: i32, %arg1: memref<8x128xf32, #tpu.memory_space<vmem>>, %arg2: memref<128x128xf32, #tpu.memory_space<vmem>>, %arg3: memref<128x128xf32, #tpu.memory_space<vmem>>, %arg4: memref<4x128xf32, #tpu.memory_space<vmem>>, %arg5: memref<8x128xf32, #tpu.memory_space<vmem>>) attributes {dimension_semantics = [#tpu.dimension_semantics<parallel>], iteration_bounds = array<i64: 2>, scalar_prefetch = 0 : i64, scratch_operands = 0 : i64, tpu.core_type = #tpu.core_type<tc>, window_params = [{transform_indices = @transform_0, window_bounds = array<i64: 8, 128>}, {pipeline_mode = #tpu.pipeline_mode<synchronous>, transform_indices = @transform_1, window_bounds = array<i64: 128, 128>}, {pipeline_mode = #tpu.pipeline_mode<synchronous>, transform_indices = @transform_2, window_bounds = array<i64: 128, 128>}, {pipeline_mode = #tpu.pipeline_mode<synchronous>, transform_indices = @transform_3, window_bounds = array<i64: 4, 128>}, {transform_indices = @transform_4, window_bounds = array<i64: 8, 128>}]} {
    %c0 = arith.constant 0 : index
    %c0_0 = arith.constant 0 : index
    %0 = vector.load %arg1[%c0, %c0_0] : memref<8x128xf32, #tpu.memory_space<vmem>>, vector<8x128xf32>
    %c0_1 = arith.constant 0 : index
    %c0_2 = arith.constant 0 : index
    %1 = vector.load %arg4[%c0_1, %c0_2] : memref<4x128xf32, #tpu.memory_space<vmem>>, vector<1x128xf32>
    %c0_3 = arith.constant 0 : index
    %c0_4 = arith.constant 0 : index
    %2 = vector.load %arg2[%c0_3, %c0_4] : memref<128x128xf32, #tpu.memory_space<vmem>>, vector<128x128xf32>
    %cst = arith.constant dense<0.000000e+00> : vector<8x128xf32>
    %3 = tpu.matmul %0, %2, %cst {dimension_numbers = #tpu.dot_dimension_numbers<[1], [0], [0], [1], [0, 0, 1, 1], [], []>} : vector<8x128xf32>, vector<128x128xf32>, vector<8x128xf32> -> vector<8x128xf32>
    %4 = vector.broadcast %1 : vector<1x128xf32> to vector<8x128xf32>
    %5 = arith.addf %3, %4 : vector<8x128xf32>
    %6 = arith.negf %5 : vector<8x128xf32>
    %7 = math.exp %6 : vector<8x128xf32>
    %cst_5 = arith.constant 1.000000e+00 : f32
    %8 = vector.broadcast %cst_5 : f32 to vector<8x128xf32>
    %9 = arith.addf %8, %7 : vector<8x128xf32>
    %10 = arith.divf %8, %9 : vector<8x128xf32>
    %11 = arith.mulf %5, %10 : vector<8x128xf32>
    %c0_6 = arith.constant 0 : index
    %c0_7 = arith.constant 0 : index
    %12 = vector.load %arg3[%c0_6, %c0_7] : memref<128x128xf32, #tpu.memory_space<vmem>>, vector<128x128xf32>
    %cst_8 = arith.constant dense<0.000000e+00> : vector<8x128xf32>
    %13 = tpu.matmul %11, %12, %cst_8 {dimension_numbers = #tpu.dot_dimension_numbers<[1], [0], [0], [1], [0, 0, 1, 1], [], []>} : vector<8x128xf32>, vector<128x128xf32>, vector<8x128xf32> -> vector<8x128xf32>
    %c0_9 = arith.constant 0 : index
    %c0_10 = arith.constant 0 : index
    %14 = vector.load %arg4[%c0_9, %c0_10] : memref<4x128xf32, #tpu.memory_space<vmem>>, vector<4x128xf32>
    %15 = vector.extract_strided_slice %14 {offsets = [1, 0], sizes = [1, 128], strides = [1, 1]} : vector<4x128xf32> to vector<1x128xf32>
    %16 = vector.extract_strided_slice %14 {offsets = [2, 0], sizes = [1, 128], strides = [1, 1]} : vector<4x128xf32> to vector<1x128xf32>
    %17 = vector.extract_strided_slice %14 {offsets = [3, 0], sizes = [1, 128], strides = [1, 1]} : vector<4x128xf32> to vector<1x128xf32>
    %18 = vector.broadcast %15 : vector<1x128xf32> to vector<8x128xf32>
    %19 = arith.addf %13, %18 : vector<8x128xf32>
    %cst_11 = arith.constant dense<0.000000e+00> : vector<8xf32>
    %20 = vector.multi_reduction <add>, %19, %cst_11 [1] : vector<8x128xf32> to vector<8xf32>
    %21 = vector.shape_cast %20 : vector<8xf32> to vector<8x1xf32>
    %22 = arith.mulf %19, %19 : vector<8x128xf32>
    %cst_12 = arith.constant dense<0.000000e+00> : vector<8xf32>
    %23 = vector.multi_reduction <add>, %22, %cst_12 [1] : vector<8x128xf32> to vector<8xf32>
    %24 = vector.shape_cast %23 : vector<8xf32> to vector<8x1xf32>
    %cst_13 = arith.constant 3.125000e-02 : f32
    %25 = vector.broadcast %cst_13 : f32 to vector<8x1xf32>
    %26 = arith.mulf %21, %25 : vector<8x1xf32>
    %cst_14 = arith.constant 3.125000e-02 : f32
    %27 = vector.broadcast %cst_14 : f32 to vector<8x1xf32>
    %28 = arith.mulf %24, %27 : vector<8x1xf32>
    %29 = arith.mulf %26, %26 : vector<8x1xf32>
    %30 = arith.subf %28, %29 : vector<8x1xf32>
    %cst_15 = arith.constant 0.000000e+00 : f32
    %31 = vector.broadcast %cst_15 : f32 to vector<8x1xf32>
    %32 = arith.maximumf %30, %31 : vector<8x1xf32>
    %33 = vector.broadcast %26 : vector<8x1xf32> to vector<8x128xf32>
    %34 = arith.subf %19, %33 : vector<8x128xf32>
    %cst_16 = arith.constant 9.99999997E-7 : f32
    %35 = vector.broadcast %cst_16 : f32 to vector<8x1xf32>
    %36 = arith.addf %32, %35 : vector<8x1xf32>
    %37 = math.rsqrt %36 : vector<8x1xf32>
    %38 = vector.broadcast %37 : vector<8x1xf32> to vector<8x128xf32>
    %39 = arith.mulf %34, %38 : vector<8x128xf32>
    %40 = vector.broadcast %16 : vector<1x128xf32> to vector<8x128xf32>
    %41 = arith.mulf %39, %40 : vector<8x128xf32>
    %42 = vector.broadcast %17 : vector<1x128xf32> to vector<8x128xf32>
    %43 = arith.addf %41, %42 : vector<8x128xf32>
    %c0_17 = arith.constant 0 : index
    %c0_18 = arith.constant 0 : index
    %44 = vector.load %arg5[%c0_17, %c0_18] : memref<8x128xf32, #tpu.memory_space<vmem>>, vector<8x128xf32>
    tpu.vector_store %arg5[%c0_17, %c0_18], %43 {strides = array<i32>} : memref<8x128xf32, #tpu.memory_space<vmem>>, vector<8x128xf32>,
    return
  }
  func.func @transform_0(%arg0: i32) -> (i32, i32) {
    %c0_i32 = arith.constant 0 : i32
    %c0_i32_0 = arith.constant 0 : i32
    return %arg0, %c0_i32 : i32, i32
  }
  func.func @transform_1(%arg0: i32) -> (i32, i32) {
    %c0_i32 = arith.constant 0 : i32
    %c0_i32_0 = arith.constant 0 : i32
    %c0_i32_1 = arith.constant 0 : i32
    return %c0_i32, %c0_i32_0 : i32, i32
  }
  func.func @transform_2(%arg0: i32) -> (i32, i32) {
    %c0_i32 = arith.constant 0 : i32
    %c0_i32_0 = arith.constant 0 : i32
    %c0_i32_1 = arith.constant 0 : i32
    return %c0_i32, %c0_i32_0 : i32, i32
  }
  func.func @transform_3(%arg0: i32) -> (i32, i32) {
    %c0_i32 = arith.constant 0 : i32
    %c0_i32_0 = arith.constant 0 : i32
    %c0_i32_1 = arith.constant 0 : i32
    return %c0_i32, %c0_i32_0 : i32, i32
  }
  func.func @transform_4(%arg0: i32) -> (i32, i32) {
    %c0_i32 = arith.constant 0 : i32
    %c0_i32_0 = arith.constant 0 : i32
    return %arg0, %c0_i32 : i32, i32
  }
}

module attributes {stable_mosaic.version = 11 : i64} {
  func.func @_kernel_resident(%arg0: i32, %arg1: memref<8x128xf32, #tpu.memory_space<vmem>>, %arg2: memref<128x128xf32, #tpu.memory_space<vmem>>, %arg3: memref<128x128xf32, #tpu.memory_space<vmem>>, %arg4: memref<4x128xf32, #tpu.memory_space<vmem>>, %arg5: memref<8x128xf32, #tpu.memory_space<vmem>>) attributes {dimension_semantics = [#tpu.dimension_semantics<parallel>], iteration_bounds = array<i64: 2>, scalar_prefetch = 0 : i64, scratch_operands = 0 : i64, tpu.core_type = #tpu.core_type<tc>, window_params = [{transform_indices = @transform_0, window_bounds = array<i64: 8, 128>}, {pipeline_mode = #tpu.pipeline_mode<synchronous>, transform_indices = @transform_1, window_bounds = array<i64: 128, 128>}, {pipeline_mode = #tpu.pipeline_mode<synchronous>, transform_indices = @transform_2, window_bounds = array<i64: 128, 128>}, {pipeline_mode = #tpu.pipeline_mode<synchronous>, transform_indices = @transform_3, window_bounds = array<i64: 4, 128>}, {transform_indices = @transform_4, window_bounds = array<i64: 8, 128>}]} {
    %c0 = arith.constant 0 : index
    %c0_0 = arith.constant 0 : index
    %0 = vector.load %arg1[%c0, %c0_0] : memref<8x128xf32, #tpu.memory_space<vmem>>, vector<8x128xf32>
    %c0_1 = arith.constant 0 : index
    %c0_2 = arith.constant 0 : index
    %1 = vector.load %arg4[%c0_1, %c0_2] : memref<4x128xf32, #tpu.memory_space<vmem>>, vector<1x128xf32>
    %c0_3 = arith.constant 0 : index
    %c0_4 = arith.constant 0 : index
    %2 = vector.load %arg2[%c0_3, %c0_4] : memref<128x128xf32, #tpu.memory_space<vmem>>, vector<128x128xf32>
    %cst = arith.constant dense<0.000000e+00> : vector<8x128xf32>
    %3 = tpu.matmul %0, %2, %cst {dimension_numbers = #tpu.dot_dimension_numbers<[1], [0], [0], [1], [0, 0, 1, 1], [], []>} : vector<8x128xf32>, vector<128x128xf32>, vector<8x128xf32> -> vector<8x128xf32>
    %4 = vector.broadcast %1 : vector<1x128xf32> to vector<8x128xf32>
    %5 = arith.addf %3, %4 : vector<8x128xf32>
    %6 = arith.negf %5 : vector<8x128xf32>
    %7 = math.exp %6 : vector<8x128xf32>
    %cst_5 = arith.constant 1.000000e+00 : f32
    %8 = vector.broadcast %cst_5 : f32 to vector<8x128xf32>
    %9 = arith.addf %8, %7 : vector<8x128xf32>
    %10 = arith.divf %8, %9 : vector<8x128xf32>
    %11 = arith.mulf %5, %10 : vector<8x128xf32>
    %c0_6 = arith.constant 0 : index
    %c0_7 = arith.constant 0 : index
    %12 = vector.load %arg3[%c0_6, %c0_7] : memref<128x128xf32, #tpu.memory_space<vmem>>, vector<128x128xf32>
    %cst_8 = arith.constant dense<0.000000e+00> : vector<8x128xf32>
    %13 = tpu.matmul %11, %12, %cst_8 {dimension_numbers = #tpu.dot_dimension_numbers<[1], [0], [0], [1], [0, 0, 1, 1], [], []>} : vector<8x128xf32>, vector<128x128xf32>, vector<8x128xf32> -> vector<8x128xf32>
    %c0_9 = arith.constant 0 : index
    %c0_10 = arith.constant 0 : index
    %14 = vector.load %arg4[%c0_9, %c0_10] : memref<4x128xf32, #tpu.memory_space<vmem>>, vector<4x128xf32>
    %15 = vector.extract_strided_slice %14 {offsets = [1, 0], sizes = [1, 128], strides = [1, 1]} : vector<4x128xf32> to vector<1x128xf32>
    %16 = vector.extract_strided_slice %14 {offsets = [2, 0], sizes = [1, 128], strides = [1, 1]} : vector<4x128xf32> to vector<1x128xf32>
    %17 = vector.extract_strided_slice %14 {offsets = [3, 0], sizes = [1, 128], strides = [1, 1]} : vector<4x128xf32> to vector<1x128xf32>
    %18 = vector.broadcast %15 : vector<1x128xf32> to vector<8x128xf32>
    %19 = arith.addf %13, %18 : vector<8x128xf32>
    %cst_11 = arith.constant dense<0.000000e+00> : vector<8xf32>
    %20 = vector.multi_reduction <add>, %19, %cst_11 [1] : vector<8x128xf32> to vector<8xf32>
    %21 = vector.shape_cast %20 : vector<8xf32> to vector<8x1xf32>
    %22 = arith.mulf %19, %19 : vector<8x128xf32>
    %cst_12 = arith.constant dense<0.000000e+00> : vector<8xf32>
    %23 = vector.multi_reduction <add>, %22, %cst_12 [1] : vector<8x128xf32> to vector<8xf32>
    %24 = vector.shape_cast %23 : vector<8xf32> to vector<8x1xf32>
    %cst_13 = arith.constant 3.125000e-02 : f32
    %25 = vector.broadcast %cst_13 : f32 to vector<8x1xf32>
    %26 = arith.mulf %21, %25 : vector<8x1xf32>
    %cst_14 = arith.constant 3.125000e-02 : f32
    %27 = vector.broadcast %cst_14 : f32 to vector<8x1xf32>
    %28 = arith.mulf %24, %27 : vector<8x1xf32>
    %29 = arith.mulf %26, %26 : vector<8x1xf32>
    %30 = arith.subf %28, %29 : vector<8x1xf32>
    %cst_15 = arith.constant 0.000000e+00 : f32
    %31 = vector.broadcast %cst_15 : f32 to vector<8x1xf32>
    %32 = arith.maximumf %30, %31 : vector<8x1xf32>
    %33 = vector.broadcast %26 : vector<8x1xf32> to vector<8x128xf32>
    %34 = arith.subf %19, %33 : vector<8x128xf32>
    %cst_16 = arith.constant 9.99999997E-7 : f32
    %35 = vector.broadcast %cst_16 : f32 to vector<8x1xf32>
    %36 = arith.addf %32, %35 : vector<8x1xf32>
    %37 = math.rsqrt %36 : vector<8x1xf32>
    %38 = vector.broadcast %37 : vector<8x1xf32> to vector<8x128xf32>
    %39 = arith.mulf %34, %38 : vector<8x128xf32>
    %40 = vector.broadcast %16 : vector<1x128xf32> to vector<8x128xf32>
    %41 = arith.mulf %39, %40 : vector<8x128xf32>
    %42 = vector.broadcast %17 : vector<1x128xf32> to vector<8x128xf32>
    %43 = arith.addf %41, %42 : vector<8x128xf32>
    %c0_17 = arith.constant 0 : index
    %c0_18 = arith.constant 0 : index
    %44 = vector.load %arg5[%c0_17, %c0_18] : memref<8x128xf32, #tpu.memory_space<vmem>>, vector<8x128xf32>
    tpu.vector_store %arg5[%c0_17, %c0_18], %43 {strides = array<i32>} : memref<8x128xf32, #tpu.memory_space<vmem>>, vector<8x128xf32>,
    return
  }
  func.func @transform_0(%arg0: i32) -> (i32, i32) {
    %c0_i32 = arith.constant 0 : i32
    %c0_i32_0 = arith.constant 0 : i32
    return %arg0, %c0_i32 : i32, i32
  }
  func.func @transform_1(%arg0: i32) -> (i32, i32) {
    %c0_i32 = arith.constant 0 : i32
    %c0_i32_0 = arith.constant 0 : i32
    %c0_i32_1 = arith.constant 0 : i32
    return %c0_i32, %c0_i32_0 : i32, i32
  }
  func.func @transform_2(%arg0: i32) -> (i32, i32) {
    %c0_i32 = arith.constant 0 : i32
    %c0_i32_0 = arith.constant 0 : i32
    %c0_i32_1 = arith.constant 0 : i32
    return %c0_i32, %c0_i32_0 : i32, i32
  }
  func.func @transform_3(%arg0: i32) -> (i32, i32) {
    %c0_i32 = arith.constant 0 : i32
    %c0_i32_0 = arith.constant 0 : i32
    %c0_i32_1 = arith.constant 0 : i32
    return %c0_i32, %c0_i32_0 : i32, i32
  }
  func.func @transform_4(%arg0: i32) -> (i32, i32) {
    %c0_i32 = arith.constant 0 : i32
    %c0_i32_0 = arith.constant 0 : i32
    return %arg0, %c0_i32 : i32, i32
  }
}

</mosaic_0001>

<llo_original>
// kernel: tpu_custom_call.1
$region0: #{tpu_custom_call.1}
  #allocation0 [shape = 'u32[]', space=smem, size = 0x4, offset = 0x4, fixed_abs, tag = 'smem constant byte address 0x4 - core index']
  #allocation1 [shape = 'u32[72,128]{1,0:T(1,128)}', space=vmem, size = 0x9000, scoped, tag = 'internal scratch']
  %s0 = inlined_call_operand.hbm [shape: f32[16,128], index: 0, kind: input, shape index: {}]
  %s1 = inlined_call_operand.hbm [shape: f32[128,128], index: 1, kind: input, shape index: {}]
  %s2 = inlined_call_operand.hbm [shape: f32[128,128], index: 2, kind: input, shape index: {}]
  %s3 = inlined_call_operand.hbm [shape: f32[4,128], index: 3, kind: input, shape index: {}]
  %s4 = inlined_call_operand.hbm [shape: f32[16,128], index: 4, kind: output, shape index: {}]
  %s5 = sld [smem:[#allocation0]]
  $region65: #{tpu_custom_call.1} parent=0
    _
  %s7 = ssub.s32 1, %s5
  %s8 = scalar_select 0, %s7, %s5
  $region1: #{tpu_custom_call.1} parent=0
    #allocation2 [shape = 'u8[8192]{0}', space=vmem, size = 0x2000, scoped, tag = 'input window, operand 0']
    #allocation3 [shape = 's32[2]{0}', space=sflag, size = 0x8, scoped, tag = 'scoped memory for tpu_custom_call.1']
    #allocation4 [shape = 's32[2]{0}', space=sflag, size = 0x8, scoped, tag = 'scoped memory for tpu_custom_call.1']
    #allocation5 [shape = 'u8[65536]{0}', space=vmem, size = 0x10000, scoped, tag = 'input window, operand 1, single buffered']
    #allocation6 [shape = 's32[1]{0}', space=sflag, size = 0x4, scoped, tag = 'scoped memory for tpu_custom_call.1']
    #allocation7 [shape = 'u8[65536]{0}', space=vmem, size = 0x10000, scoped, tag = 'input window, operand 2, single buffered']
    #allocation8 [shape = 'u8[2048]{0}', space=vmem, size = 0x800, scoped, tag = 'input window, operand 3, single buffered']
    #allocation9 [shape = 's32[1]{0}', space=sflag, size = 0x4, scoped, tag = 'scoped memory for tpu_custom_call.1']
    #allocation10 [shape = 'u8[8192]{0}', space=vmem, size = 0x2000, scoped, tag = 'output window, operand 0']
    %9 = vsyncpa [#allocation3], 0
    %s10 = scalar_lea.sflag [#allocation3], 1
    %11 = vsyncpa %s10, 0
    %12 = vsyncpa [#allocation6], 0
    %13 = vsyncpa [#allocation9], 0
    %14 = vsyncpa [#allocation4], 0
    %s15 = scalar_lea.sflag [#allocation4], 1
    %16 = vsyncpa %s15, 0
    loop: start=0, step=1, limit=4
    $region2: #{tpu_custom_call.1} parent=1 // loop_pre_header
      _
    $region3: #{tpu_custom_call.1} parent=1 // loop_header
      %s18 = sphi 0, %s22
      %p19 = scmp.ge.s32.totalorder %s18, 4
      %s28 = sphi 0, %s30
      %s31 = sphi 0, %s28
      %s32 = sphi 0, %s31
      %s48 = sphi 0, %s32
      %s52 = sphi 0, %s52
      %s54 = sphi 0, %s52
      %s55 = sphi 0, %s54
      %s69 = sphi 0, %s55
      %s73 = sphi 0, %s73
      %s75 = sphi 0, %s73
      %s76 = sphi 0, %s75
      %s90 = sphi 0, %s76
      %s94 = sphi 0, %s94
      %s96 = sphi 0, %s94
      %s97 = sphi 0, %s96
      %s111 = sphi 0, %s97
      %s117 = sphi 0, %s119
      %s120 = sphi 0, %s117
      %s121 = sphi 0, %s120
      %s137 = sphi 0, %s121
    $region4: #{tpu_custom_call.1} parent=1 // loop_header_branch
      %21 = sbr.rel (%p19) target = $region8
    $region5: #{tpu_custom_call.1} parent=1 // loop_body
      %s23 = ssub.s32 %s18, 1
      %s24 = ssub.s32 %s18, 2
      %s25 = sadd.s32 %s18, 1
      %s26 = ssub.s32 %s18, %s25
      %p27 = scmp.eq.s32.totalorder %s26, 0
      %s29 = sadd.s32 %s28, 1
      %s30 = scalar_select %p27, %s28, %s29
      %p33 = pneg %p27
      %p34 = scmp.eq.s32.totalorder %s18, 1
      %p35 = por %p33, %p34
      %p36 = scmp.ne.s32.totalorder %s28, %s31
      %p37 = scmp.eq.s32.totalorder %s18, 0
      %p38 = por %p36, %p37
      %p39 = scmp.ne.s32.totalorder %s28, %s31
      %p40 = scmp.eq.s32.totalorder %s23, 1
      %p41 = por %p39, %p40
      %p42 = scmp.ne.s32.totalorder %s31, %s32
      %p43 = scmp.eq.s32.totalorder %s23, 0
      %p44 = por %p42, %p43
      %p45 = scmp.ne.s32.totalorder %s31, %s32
      %p46 = scmp.eq.s32.totalorder %s24, 1
      %p47 = por %p45, %p46
      %p49 = scmp.ne.s32.totalorder %s32, %s48
      %p50 = scmp.eq.s32.totalorder %s24, 0
      %p51 = por %p49, %p50
      %s53 = sadd.s32 %s52, 1
      %p56 = scmp.eq.s32.totalorder %s18, 1
      %p57 = scmp.ne.s32.totalorder %s52, %s54
      %p58 = scmp.eq.s32.totalorder %s18, 0
      %p59 = por %p57, %p58
      %p60 = scmp.ne.s32.totalorder %s52, %s54
      %p61 = scmp.eq.s32.totalorder %s23, 1
      %p62 = por %p60, %p61
      %p63 = scmp.ne.s32.totalorder %s54, %s55
      %p64 = scmp.eq.s32.totalorder %s23, 0
      %p65 = por %p63, %p64
      %p66 = scmp.ne.s32.totalorder %s54, %s55
      %p67 = scmp.eq.s32.totalorder %s24, 1
      %p68 = por %p66, %p67
      %p70 = scmp.ne.s32.totalorder %s55, %s69
      %p71 = scmp.eq.s32.totalorder %s24, 0
      %p72 = por %p70, %p71
      %s74 = sadd.s32 %s73, 1
      %p77 = scmp.eq.s32.totalorder %s18, 1
      %p78 = scmp.ne.s32.totalorder %s73, %s75
      %p79 = scmp.eq.s32.totalorder %s18, 0
      %p80 = por %p78, %p79
      %p81 = scmp.ne.s32.totalorder %s73, %s75
      %p82 = scmp.eq.s32.totalorder %s23, 1
      %p83 = por %p81, %p82
      %p84 = scmp.ne.s32.totalorder %s75, %s76
      %p85 = scmp.eq.s32.totalorder %s23, 0
      %p86 = por %p84, %p85
      %p87 = scmp.ne.s32.totalorder %s75, %s76
      %p88 = scmp.eq.s32.totalorder %s24, 1
      %p89 = por %p87, %p88
      %p91 = scmp.ne.s32.totalorder %s76, %s90
      %p92 = scmp.eq.s32.totalorder %s24, 0
      %p93 = por %p91, %p92
      %s95 = sadd.s32 %s94, 1
      %p98 = scmp.eq.s32.totalorder %s18, 1
      %p99 = scmp.ne.s32.totalorder %s94, %s96
      %p100 = scmp.eq.s32.totalorder %s18, 0
      %p101 = por %p99, %p100
      %p102 = scmp.ne.s32.totalorder %s94, %s96
      %p103 = scmp.eq.s32.totalorder %s23, 1
      %p104 = por %p102, %p103
      %p105 = scmp.ne.s32.totalorder %s96, %s97
      %p106 = scmp.eq.s32.totalorder %s23, 0
      %p107 = por %p105, %p106
      %p108 = scmp.ne.s32.totalorder %s96, %s97
      %p109 = scmp.eq.s32.totalorder %s24, 1
      %p110 = por %p108, %p109
      %p112 = scmp.ne.s32.totalorder %s97, %s111
      %p113 = scmp.eq.s32.totalorder %s24, 0
      %p114 = por %p112, %p113
      %s115 = ssub.s32 %s18, %s25
      %p116 = scmp.eq.s32.totalorder %s115, 0
      %s118 = sadd.s32 %s117, 1
      %s119 = scalar_select %p116, %s117, %s118
      %p122 = pneg %p116
      %p123 = scmp.eq.s32.totalorder %s18, 1
      %p124 = por %p122, %p123
      %p125 = scmp.ne.s32.totalorder %s117, %s120
      %p126 = scmp.eq.s32.totalorder %s18, 0
      %p127 = por %p125, %p126
      %p128 = scmp.ne.s32.totalorder %s117, %s120
      %p129 = scmp.eq.s32.totalorder %s23, 1
      %p130 = por %p128, %p129
      %p131 = scmp.ne.s32.totalorder %s120, %s121
      %p132 = scmp.eq.s32.totalorder %s23, 0
      %p133 = por %p131, %p132
      %p134 = scmp.ne.s32.totalorder %s120, %s121
      %p135 = scmp.eq.s32.totalorder %s24, 1
      %p136 = por %p134, %p135
      %p138 = scmp.ne.s32.totalorder %s121, %s137
      %p139 = scmp.eq.s32.totalorder %s24, 0
      %p140 = por %p138, %p139
      %p141 = scmp.le.s32.totalorder 1, %s18
      %p142 = scmp.lt.s32.totalorder %s18, 3
      %p143 = pnand %p141, %p142
      %p144 = pneg %p143
      // Predicated region
      $region9: #{tpu_custom_call.1} parent=5 // pred_check
        _
      $region10: #{tpu_custom_call.1} parent=5 // pred_check_branch
        %146 = sbr.rel (%p143) target = $region12
      $region11: #{tpu_custom_call.1} parent=5 // pred_region
        %s147 = ssub.s32 %s18, 1
        // Predicated region
        $region13: #{tpu_custom_call.1} parent=11 // pred_check
          %p148 = pneg %p65
        $region14: #{tpu_custom_call.1} parent=11 // pred_check_branch
          %150 = sbr.rel (%p148) target = $region16
        $region15: #{tpu_custom_call.1} parent=11 // pred_region
          %152 = vsyncadd [#allocation6], 0
          %s153 = sshll.u32 %s1, 4
          %s154 = int_to_ptr.hbm [resolvable:$true] %s153
          %s155 = sshll.u32 [#allocation5], 4
          %s156 = int_to_ptr.vmem [resolvable:$true] %s155
          %161 = dma.hbm_to_vmem [thread:$0]  %s154, 2048, %s156, [#allocation6], 128, 128, 8
        $region16: #{tpu_custom_call.1} parent=11 // pred_fallthru
          _
        // Predicated region
        $region17: #{tpu_custom_call.1} parent=11 // pred_check
          %p162 = pneg %p86
        $region18: #{tpu_custom_call.1} parent=11 // pred_check_branch
          %164 = sbr.rel (%p162) target = $region20
        $region19: #{tpu_custom_call.1} parent=11 // pred_region
          %166 = vsyncadd [#allocation6], 0
          %s167 = sshll.u32 %s2, 4
          %s168 = int_to_ptr.hbm [resolvable:$true] %s167
          %s169 = sshll.u32 [#allocation7], 4
          %s170 = int_to_ptr.vmem [resolvable:$true] %s169
          %175 = dma.hbm_to_vmem [thread:$0]  %s168, 2048, %s170, [#allocation6], 128, 128, 8
        $region20: #{tpu_custom_call.1} parent=11 // pred_fallthru
          _
        // Predicated region
        $region21: #{tpu_custom_call.1} parent=11 // pred_check
          %p176 = pneg %p107
        $region22: #{tpu_custom_call.1} parent=11 // pred_check_branch
          %178 = sbr.rel (%p176) target = $region24
        $region23: #{tpu_custom_call.1} parent=11 // pred_region
          %180 = vsyncadd [#allocation9], 0
          %s182 = sshll.u32 %s3, 4
          %s183 = int_to_ptr.hbm [resolvable:$true] %s182
          %s184 = sshll.u32 [#allocation8], 4
          %s185 = int_to_ptr.vmem [resolvable:$true] %s184
          %187 = dma.hbm_to_vmem [thread:$0]  %s183, 64, %s185, [#allocation9]
        $region24: #{tpu_custom_call.1} parent=11 // pred_fallthru
          _
      $region12: #{tpu_custom_call.1} parent=5 // pred_fallthru
        _
      %p188 = scmp.lt.s32.totalorder %s18, 2
      // Predicated region
      $region25: #{tpu_custom_call.1} parent=5 // pred_check
        %p189 = pneg %p188
      $region26: #{tpu_custom_call.1} parent=5 // pred_check_branch
        %191 = sbr.rel (%p189) target = $region28
      $region27: #{tpu_custom_call.1} parent=5 // pred_region
        // Predicated region
        $region29: #{tpu_custom_call.1} parent=27 // pred_check
          %p192 = pneg %p38
        $region30: #{tpu_custom_call.1} parent=27 // pred_check_branch
          %194 = sbr.rel (%p192) target = $region32
        $region31: #{tpu_custom_call.1} parent=27 // pred_region
          %s195 = sand.u32 %s28, 1
          %s196 = scalar_lea.sflag [#allocation3], %s195
          %s197 = sand.u32 %s28, 1
          %s198 = smul.addr %s197, 8
          %s199 = scalar_lea.vmem [#allocation2], %s198
          %201 = vsyncadd %s196, 0
          %s202 = smul.addr %s18, 8
          %s203 = scalar_lea.hbm %s0, %s202
          %s205 = sshll.u32 %s203, 4
          %s206 = int_to_ptr.hbm [resolvable:$true] %s205
          %s207 = sshll.u32 %s199, 4
          %s208 = int_to_ptr.vmem [resolvable:$true] %s207
          %210 = dma.hbm_to_vmem [thread:$0]  %s206, 128, %s208, %s196
        $region32: #{tpu_custom_call.1} parent=27 // pred_fallthru
          _
      $region28: #{tpu_custom_call.1} parent=5 // pred_fallthru
        _
      %p211 = scmp.le.s32.totalorder 1, %s18
      %p212 = scmp.lt.s32.totalorder %s18, 3
      %p213 = pnand %p211, %p212
      %p214 = pneg %p213
      // Predicated region
      $region33: #{tpu_custom_call.1} parent=5 // pred_check
        _
      $region34: #{tpu_custom_call.1} parent=5 // pred_check_branch
        %216 = sbr.rel (%p213) target = $region36
      $region35: #{tpu_custom_call.1} parent=5 // pred_region
        %s217 = ssub.s32 %s18, 1
        %s218 = sand.u32 %s31, 1
        %s219 = scalar_lea.sflag [#allocation3], %s218
        %s220 = sand.u32 %s31, 1
        %s221 = smul.addr %s220, 8
        %s222 = scalar_lea.vmem [#allocation2], %s221
        // Predicated region
        $region37: #{tpu_custom_call.1} parent=35 // pred_check
          %p223 = pneg %p44
        $region38: #{tpu_custom_call.1} parent=35 // pred_check_branch
          %225 = sbr.rel (%p223) target = $region40
        $region39: #{tpu_custom_call.1} parent=35 // pred_region
          %227 = dma.done %s219, 128
        $region40: #{tpu_custom_call.1} parent=35 // pred_fallthru
          _
        // Predicated region
        $region41: #{tpu_custom_call.1} parent=35 // pred_check
          %p228 = pneg %p65
        $region42: #{tpu_custom_call.1} parent=35 // pred_check_branch
          %230 = sbr.rel (%p228) target = $region44
        $region43: #{tpu_custom_call.1} parent=35 // pred_region
          %232 = dma.done [#allocation6], 2048
        $region44: #{tpu_custom_call.1} parent=35 // pred_fallthru
          _
        // Predicated region
        $region45: #{tpu_custom_call.1} parent=35 // pred_check
          %p233 = pneg %p86
        $region46: #{tpu_custom_call.1} parent=35 // pred_check_branch
          %235 = sbr.rel (%p233) target = $region48
        $region47: #{tpu_custom_call.1} parent=35 // pred_region
          %237 = dma.done [#allocation6], 2048
        $region48: #{tpu_custom_call.1} parent=35 // pred_fallthru
          _
        // Predicated region
        $region49: #{tpu_custom_call.1} parent=35 // pred_check
          %p238 = pneg %p107
        $region50: #{tpu_custom_call.1} parent=35 // pred_check_branch
          %240 = sbr.rel (%p238) target = $region52
        $region51: #{tpu_custom_call.1} parent=35 // pred_region
          %242 = dma.done [#allocation9], 64
        $region52: #{tpu_custom_call.1} parent=35 // pred_fallthru
          _
        %s243 = sand.u32 %s31, 1
        %s244 = scalar_lea.sflag [#allocation3], %s243
        %s245 = sand.u32 %s31, 1
        %s246 = smul.addr %s245, 8
        %s247 = scalar_lea.vmem [#allocation2], %s246
        %p248 = pneg %p44
        %p249 = pneg %p41
        %p250 = pneg %p65
        %p251 = pneg %p62
        %p252 = pneg %p86
        %p253 = pneg %p83
        %p254 = pneg %p107
        %p255 = pneg %p104
        %p256 = pneg %p133
        %p257 = pneg %p130
        %s258 = sand.u32 %s120, 1
        %s259 = scalar_lea.sflag [#allocation4], %s258
        %s260 = sand.u32 %s120, 1
        %s261 = smul.addr %s260, 8
        %s262 = scalar_lea.vmem [#allocation10], %s261
        %v263 = vld [vmem:[%s222] sm:$0xff]
        %v264 = vld [vmem:[#allocation8] sm:$0x1]
        %v265 = vld [vmem:[#allocation5] sm:$0xff]
        %v266 = vld [vmem:[#allocation5 + $0x8] sm:$0xff]
        %v267 = vld [vmem:[#allocation5 + $0x10] sm:$0xff]
        %v268 = vld [vmem:[#allocation5 + $0x18] sm:$0xff]
        %v269 = vld [vmem:[#allocation5 + $0x20] sm:$0xff]
        %v270 = vld [vmem:[#allocation5 + $0x28] sm:$0xff]
        %v271 = vld [vmem:[#allocation5 + $0x30] sm:$0xff]
        %v272 = vld [vmem:[#allocation5 + $0x38] sm:$0xff]
        %v273 = vld [vmem:[#allocation5 + $0x40] sm:$0xff]
        %v274 = vld [vmem:[#allocation5 + $0x48] sm:$0xff]
        %v275 = vld [vmem:[#allocation5 + $0x50] sm:$0xff]
        %v276 = vld [vmem:[#allocation5 + $0x58] sm:$0xff]
        %v277 = vld [vmem:[#allocation5 + $0x60] sm:$0xff]
        %v278 = vld [vmem:[#allocation5 + $0x68] sm:$0xff]
        %v279 = vld [vmem:[#allocation5 + $0x70] sm:$0xff]
        %v280 = vld [vmem:[#allocation5 + $0x78] sm:$0xff]
        %v281 = vperm.slane %v264, 0
        %282 = vmatpush.msra.mxu0 %v280
        %283 = vmatpush.msra.mxu0 %v279
        %284 = vmatpush.msra.mxu0 %v278
        %285 = vmatpush.msra.mxu0 %v277
        %286 = vmatpush.msra.mxu0 %v276
        %287 = vmatpush.msra.mxu0 %v275
        %288 = vmatpush.msra.mxu0 %v274
        %289 = vmatpush.msra.mxu0 %v273
        %290 = vmatpush.msra.mxu0 %v272
        %291 = vmatpush.msra.mxu0 %v271
        %292 = vmatpush.msra.mxu0 %v270
        %293 = vmatpush.msra.mxu0 %v269
        %294 = vmatpush.msra.mxu0 %v268
        %295 = vmatpush.msra.mxu0 %v267
        %296 = vmatpush.msra.mxu0 %v266
        %297 = vmatpush.msra.mxu0 %v265
        %298 = vmatmul.f32.gmra.mxu0 %v263
        %v299 = vpop.f32.mrf.mxu0
        %v300 = vadd.f32 %v281, %v299
        %301 = vdwg.mxu0
        %v302 = vxor.u32 %v300, 2147483648
        %v303 = vmul.f32 %v302, 1.442695
        %v304 = vpow.pop %v303
        %v305 = vadd.f32 %v304, 1.0
        %v306 = vrcp.pop %v305
        %v307 = vmul.f32 %v305, %v306
        %v308 = vsub.f32 1.0, %v307
        %v309 = vmul.f32 %v306, %v308
        %v310 = vadd.f32 %v306, %v309
        %vm311 = vweird.f32 %v305
        %vm312 = vweird.f32 %v306
        %vm313 = vmor %vm311, %vm312
        %v314 = vsel %vm313, %v306, %v310
        %v315 = vand.u32 2147483647, %v305
        %vm316 = vcmp.eq.f32.partialorder %v315, 8.507059e+37
        %v317 = vand.u32 %v305, 2147483648
        %v318 = vor.u32 1.1754944e-38, %v317
        %v319 = vsel %vm316, %v318, %v314
        %v320 = vmul.f32 1.0, %v319
        %v321 = vmul.f32 %v300, %v320
        %v322 = vld [vmem:[#allocation7] sm:$0xff]
        %v323 = vld [vmem:[#allocation7 + $0x8] sm:$0xff]
        %v324 = vld [vmem:[#allocation7 + $0x10] sm:$0xff]
        %v325 = vld [vmem:[#allocation7 + $0x18] sm:$0xff]
        %v326 = vld [vmem:[#allocation7 + $0x20] sm:$0xff]
        %v327 = vld [vmem:[#allocation7 + $0x28] sm:$0xff]
        %v328 = vld [vmem:[#allocation7 + $0x30] sm:$0xff]
        %v329 = vld [vmem:[#allocation7 + $0x38] sm:$0xff]
        %v330 = vld [vmem:[#allocation7 + $0x40] sm:$0xff]
        %v331 = vld [vmem:[#allocation7 + $0x48] sm:$0xff]
        %v332 = vld [vmem:[#allocation7 + $0x50] sm:$0xff]
        %v333 = vld [vmem:[#allocation7 + $0x58] sm:$0xff]
        %v334 = vld [vmem:[#allocation7 + $0x60] sm:$0xff]
        %v335 = vld [vmem:[#allocation7 + $0x68] sm:$0xff]
        %v336 = vld [vmem:[#allocation7 + $0x70] sm:$0xff]
        %v337 = vld [vmem:[#allocation7 + $0x78] sm:$0xff]
        %v338 = vld [vmem:[#allocation8] sm:$0xf]
        %v339 = vperm.slane %v338, 1
        %340 = vmatpush.msra.mxu0 %v337
        %341 = vmatpush.msra.mxu0 %v336
        %342 = vmatpush.msra.mxu0 %v335
        %343 = vmatpush.msra.mxu0 %v334
        %344 = vmatpush.msra.mxu0 %v333
        %345 = vmatpush.msra.mxu0 %v332
        %346 = vmatpush.msra.mxu0 %v331
        %347 = vmatpush.msra.mxu0 %v330
        %348 = vmatpush.msra.mxu0 %v329
        %349 = vmatpush.msra.mxu0 %v328
        %350 = vmatpush.msra.mxu0 %v327
        %351 = vmatpush.msra.mxu0 %v326
        %352 = vmatpush.msra.mxu0 %v325
        %353 = vmatpush.msra.mxu0 %v324
        %354 = vmatpush.msra.mxu0 %v323
        %355 = vmatpush.msra.mxu0 %v322
        %356 = vmatmul.f32.gmra.mxu0 %v321
        %v357 = vpop.f32.mrf.mxu0
        %v358 = vadd.f32 %v339, %v357
        %359 = vdwg.mxu0
        %360 = vadd.xlane.f32.xlu0 %v358
        %v361 = vpop.xlane.xlu0 %360
        %v362 = vmul.f32 %v358, %v358
        %363 = vadd.xlane.f32.xlu0 %v362
        %v364 = vpop.xlane.xlu0 %363
        %v365 = vmul.f32 %v361, 0.03125
        %v366 = vmul.f32 %v364, 0.03125
        %v367 = vmul.f32 %v365, %v365
        %v368 = vsub.f32 %v366, %v367
        %v369 = vmax.f32 %v368, 0.0
        %v370 = vsub.f32 %v358, %v365
        %v371 = vadd.f32 %v369, 1e-06
        %v372 = vrsqrt.pop %v371
        %v373 = vmul.f32 %v372, %v371
        %v374 = vmul.f32 %v373, %v372
        %v375 = vmul.f32 0.5, %v374
        %v376 = vsub.f32 1.5, %v375
        %v377 = vmul.f32 %v372, %v376
        %vm378 = vweird.f32 %v371
        %vm379 = vweird.f32 %v372
        %vm380 = vmor %vm378, %vm379
        %v381 = vsel %vm380, %v372, %v377
        %v382 = vmul.f32 %v370, %v381
        %v383 = vperm.slane %v338, 2
        %v384 = vmul.f32 %v382, %v383
        %v385 = vperm.slane %v338, 3
        %v386 = vadd.f32 %v384, %v385
        %387 = vst [vmem:[%s262] sm:$0xff] %v386
        %s388 = sand.u32 %s120, 1
        %s389 = scalar_lea.sflag [#allocation4], %s388
        %s390 = sand.u32 %s120, 1
        %s391 = smul.addr %s390, 8
        %s392 = scalar_lea.vmem [#allocation10], %s391
        // Predicated region
        $region53: #{tpu_custom_call.1} parent=35 // pred_check
          %p393 = pneg %p130
        $region54: #{tpu_custom_call.1} parent=35 // pred_check_branch
          %395 = sbr.rel (%p393) target = $region56
        $region55: #{tpu_custom_call.1} parent=35 // pred_region
          %397 = vsyncadd %s389, 0
          %s398 = smul.addr %s23, 8
          %s399 = scalar_lea.hbm %s4, %s398
          %s401 = sshll.u32 %s392, 4
          %s402 = int_to_ptr.vmem [resolvable:$true] %s401
          %s403 = sshll.u32 %s399, 4
          %s404 = int_to_ptr.hbm [resolvable:$true] %s403
          %406 = dma.vmem_to_hbm [thread:$0]  %s402, 128, %s404, %s389
        $region56: #{tpu_custom_call.1} parent=35 // pred_fallthru
          _
      $region36: #{tpu_custom_call.1} parent=5 // pred_fallthru
        _
      %p407 = scmp.le.s32.totalorder 2, %s18
      // Predicated region
      $region57: #{tpu_custom_call.1} parent=5 // pred_check
        %p408 = pneg %p407
      $region58: #{tpu_custom_call.1} parent=5 // pred_check_branch
        %410 = sbr.rel (%p408) target = $region60
      $region59: #{tpu_custom_call.1} parent=5 // pred_region
        %s411 = ssub.s32 %s18, 2
        // Predicated region
        $region61: #{tpu_custom_call.1} parent=59 // pred_check
          %p412 = pneg %p136
        $region62: #{tpu_custom_call.1} parent=59 // pred_check_branch
          %414 = sbr.rel (%p412) target = $region64
        $region63: #{tpu_custom_call.1} parent=59 // pred_region
          %s415 = sand.u32 %s121, 1
          %s416 = scalar_lea.sflag [#allocation4], %s415
          %s417 = sand.u32 %s121, 1
          %s418 = smul.addr %s417, 8
          %s419 = scalar_lea.vmem [#allocation10], %s418
          %421 = dma.done %s416, 128
        $region64: #{tpu_custom_call.1} parent=59 // pred_fallthru
          _
      $region60: #{tpu_custom_call.1} parent=5 // pred_fallthru
        _
    $region6: #{tpu_custom_call.1} parent=1 // loop_footer
      %s22 = sadd.s32 1, %s18
    $region7: #{tpu_custom_call.1} parent=1 // loop_footer_branch
      %17 = sbr.rel target = $region3
    $region8: #{tpu_custom_call.1} parent=1 // loop_exit
      _
    %422 = vsyncpa [#allocation3], 1
    %s423 = scalar_lea.sflag [#allocation3], 1
    %424 = vsyncpa %s423, 1
    %425 = vsyncpa [#allocation6], 1
    %426 = vsyncpa [#allocation9], 1
    %427 = vsyncpa [#allocation4], 1
    %s428 = scalar_lea.sflag [#allocation4], 1
    %429 = vsyncpa %s428, 1

// kernel: tpu_custom_call.1
$region0: #{tpu_custom_call.1}
  #allocation0 [shape = 'u32[]', space=smem, size = 0x4, offset = 0x4, fixed_abs, tag = 'smem constant byte address 0x4 - core index']
  #allocation1 [shape = 'u32[72,128]{1,0:T(1,128)}', space=vmem, size = 0x9000, scoped, tag = 'internal scratch']
  %s0 = inlined_call_operand.hbm [shape: f32[16,128], index: 0, kind: input, shape index: {}]
  %s1 = inlined_call_operand.hbm [shape: f32[128,128], index: 1, kind: input, shape index: {}]
  %s2 = inlined_call_operand.hbm [shape: f32[128,128], index: 2, kind: input, shape index: {}]
  %s3 = inlined_call_operand.hbm [shape: f32[4,128], index: 3, kind: input, shape index: {}]
  %s4 = inlined_call_operand.hbm [shape: f32[16,128], index: 4, kind: output, shape index: {}]
  %s5 = sld [smem:[#allocation0]]
  $region65: #{tpu_custom_call.1} parent=0
    _
  %s7 = ssub.s32 1, %s5
  %s8 = scalar_select 0, %s7, %s5
  $region1: #{tpu_custom_call.1} parent=0
    #allocation2 [shape = 'u8[8192]{0}', space=vmem, size = 0x2000, scoped, tag = 'input window, operand 0']
    #allocation3 [shape = 's32[2]{0}', space=sflag, size = 0x8, scoped, tag = 'scoped memory for tpu_custom_call.1']
    #allocation4 [shape = 's32[2]{0}', space=sflag, size = 0x8, scoped, tag = 'scoped memory for tpu_custom_call.1']
    #allocation5 [shape = 'u8[65536]{0}', space=vmem, size = 0x10000, scoped, tag = 'input window, operand 1, single buffered']
    #allocation6 [shape = 's32[1]{0}', space=sflag, size = 0x4, scoped, tag = 'scoped memory for tpu_custom_call.1']
    #allocation7 [shape = 'u8[65536]{0}', space=vmem, size = 0x10000, scoped, tag = 'input window, operand 2, single buffered']
    #allocation8 [shape = 'u8[2048]{0}', space=vmem, size = 0x800, scoped, tag = 'input window, operand 3, single buffered']
    #allocation9 [shape = 's32[1]{0}', space=sflag, size = 0x4, scoped, tag = 'scoped memory for tpu_custom_call.1']
    #allocation10 [shape = 'u8[8192]{0}', space=vmem, size = 0x2000, scoped, tag = 'output window, operand 0']
    %9 = vsyncpa [#allocation3], 0
    %s10 = scalar_lea.sflag [#allocation3], 1
    %11 = vsyncpa %s10, 0
    %12 = vsyncpa [#allocation6], 0
    %13 = vsyncpa [#allocation9], 0
    %14 = vsyncpa [#allocation4], 0
    %s15 = scalar_lea.sflag [#allocation4], 1
    %16 = vsyncpa %s15, 0
    loop: start=0, step=1, limit=4
    $region2: #{tpu_custom_call.1} parent=1 // loop_pre_header
      _
    $region3: #{tpu_custom_call.1} parent=1 // loop_header
      %s18 = sphi 0, %s22
      %p19 = scmp.ge.s32.totalorder %s18, 4
      %s28 = sphi 0, %s30
      %s31 = sphi 0, %s28
      %s32 = sphi 0, %s31
      %s48 = sphi 0, %s32
      %s52 = sphi 0, %s52
      %s54 = sphi 0, %s52
      %s55 = sphi 0, %s54
      %s69 = sphi 0, %s55
      %s73 = sphi 0, %s73
      %s75 = sphi 0, %s73
      %s76 = sphi 0, %s75
      %s90 = sphi 0, %s76
      %s94 = sphi 0, %s94
      %s96 = sphi 0, %s94
      %s97 = sphi 0, %s96
      %s111 = sphi 0, %s97
      %s117 = sphi 0, %s119
      %s120 = sphi 0, %s117
      %s121 = sphi 0, %s120
      %s137 = sphi 0, %s121
    $region4: #{tpu_custom_call.1} parent=1 // loop_header_branch
      %21 = sbr.rel (%p19) target = $region8
    $region5: #{tpu_custom_call.1} parent=1 // loop_body
      %s23 = ssub.s32 %s18, 1
      %s24 = ssub.s32 %s18, 2
      %s25 = sadd.s32 %s18, 1
      %s26 = ssub.s32 %s18, %s25
      %p27 = scmp.eq.s32.totalorder %s26, 0
      %s29 = sadd.s32 %s28, 1
      %s30 = scalar_select %p27, %s28, %s29
      %p33 = pneg %p27
      %p34 = scmp.eq.s32.totalorder %s18, 1
      %p35 = por %p33, %p34
      %p36 = scmp.ne.s32.totalorder %s28, %s31
      %p37 = scmp.eq.s32.totalorder %s18, 0
      %p38 = por %p36, %p37
      %p39 = scmp.ne.s32.totalorder %s28, %s31
      %p40 = scmp.eq.s32.totalorder %s23, 1
      %p41 = por %p39, %p40
      %p42 = scmp.ne.s32.totalorder %s31, %s32
      %p43 = scmp.eq.s32.totalorder %s23, 0
      %p44 = por %p42, %p43
      %p45 = scmp.ne.s32.totalorder %s31, %s32
      %p46 = scmp.eq.s32.totalorder %s24, 1
      %p47 = por %p45, %p46
      %p49 = scmp.ne.s32.totalorder %s32, %s48
      %p50 = scmp.eq.s32.totalorder %s24, 0
      %p51 = por %p49, %p50
      %s53 = sadd.s32 %s52, 1
      %p56 = scmp.eq.s32.totalorder %s18, 1
      %p57 = scmp.ne.s32.totalorder %s52, %s54
      %p58 = scmp.eq.s32.totalorder %s18, 0
      %p59 = por %p57, %p58
      %p60 = scmp.ne.s32.totalorder %s52, %s54
      %p61 = scmp.eq.s32.totalorder %s23, 1
      %p62 = por %p60, %p61
      %p63 = scmp.ne.s32.totalorder %s54, %s55
      %p64 = scmp.eq.s32.totalorder %s23, 0
      %p65 = por %p63, %p64
      %p66 = scmp.ne.s32.totalorder %s54, %s55
      %p67 = scmp.eq.s32.totalorder %s24, 1
      %p68 = por %p66, %p67
      %p70 = scmp.ne.s32.totalorder %s55, %s69
      %p71 = scmp.eq.s32.totalorder %s24, 0
      %p72 = por %p70, %p71
      %s74 = sadd.s32 %s73, 1
      %p77 = scmp.eq.s32.totalorder %s18, 1
      %p78 = scmp.ne.s32.totalorder %s73, %s75
      %p79 = scmp.eq.s32.totalorder %s18, 0
      %p80 = por %p78, %p79
      %p81 = scmp.ne.s32.totalorder %s73, %s75
      %p82 = scmp.eq.s32.totalorder %s23, 1
      %p83 = por %p81, %p82
      %p84 = scmp.ne.s32.totalorder %s75, %s76
      %p85 = scmp.eq.s32.totalorder %s23, 0
      %p86 = por %p84, %p85
      %p87 = scmp.ne.s32.totalorder %s75, %s76
      %p88 = scmp.eq.s32.totalorder %s24, 1
      %p89 = por %p87, %p88
      %p91 = scmp.ne.s32.totalorder %s76, %s90
      %p92 = scmp.eq.s32.totalorder %s24, 0
      %p93 = por %p91, %p92
      %s95 = sadd.s32 %s94, 1
      %p98 = scmp.eq.s32.totalorder %s18, 1
      %p99 = scmp.ne.s32.totalorder %s94, %s96
      %p100 = scmp.eq.s32.totalorder %s18, 0
      %p101 = por %p99, %p100
      %p102 = scmp.ne.s32.totalorder %s94, %s96
      %p103 = scmp.eq.s32.totalorder %s23, 1
      %p104 = por %p102, %p103
      %p105 = scmp.ne.s32.totalorder %s96, %s97
      %p106 = scmp.eq.s32.totalorder %s23, 0
      %p107 = por %p105, %p106
      %p108 = scmp.ne.s32.totalorder %s96, %s97
      %p109 = scmp.eq.s32.totalorder %s24, 1
      %p110 = por %p108, %p109
      %p112 = scmp.ne.s32.totalorder %s97, %s111
      %p113 = scmp.eq.s32.totalorder %s24, 0
      %p114 = por %p112, %p113
      %s115 = ssub.s32 %s18, %s25
      %p116 = scmp.eq.s32.totalorder %s115, 0
      %s118 = sadd.s32 %s117, 1
      %s119 = scalar_select %p116, %s117, %s118
      %p122 = pneg %p116
      %p123 = scmp.eq.s32.totalorder %s18, 1
      %p124 = por %p122, %p123
      %p125 = scmp.ne.s32.totalorder %s117, %s120
      %p126 = scmp.eq.s32.totalorder %s18, 0
      %p127 = por %p125, %p126
      %p128 = scmp.ne.s32.totalorder %s117, %s120
      %p129 = scmp.eq.s32.totalorder %s23, 1
      %p130 = por %p128, %p129
      %p131 = scmp.ne.s32.totalorder %s120, %s121
      %p132 = scmp.eq.s32.totalorder %s23, 0
      %p133 = por %p131, %p132
      %p134 = scmp.ne.s32.totalorder %s120, %s121
      %p135 = scmp.eq.s32.totalorder %s24, 1
      %p136 = por %p134, %p135
      %p138 = scmp.ne.s32.totalorder %s121, %s137
      %p139 = scmp.eq.s32.totalorder %s24, 0
      %p140 = por %p138, %p139
      %p141 = scmp.le.s32.totalorder 1, %s18
      %p142 = scmp.lt.s32.totalorder %s18, 3
      %p143 = pnand %p141, %p142
      %p144 = pneg %p143
      // Predicated region
      $region9: #{tpu_custom_call.1} parent=5 // pred_check
        _
      $region10: #{tpu_custom_call.1} parent=5 // pred_check_branch
        %146 = sbr.rel (%p143) target = $region12
      $region11: #{tpu_custom_call.1} parent=5 // pred_region
        %s147 = ssub.s32 %s18, 1
        // Predicated region
        $region13: #{tpu_custom_call.1} parent=11 // pred_check
          %p148 = pneg %p65
        $region14: #{tpu_custom_call.1} parent=11 // pred_check_branch
          %150 = sbr.rel (%p148) target = $region16
        $region15: #{tpu_custom_call.1} parent=11 // pred_region
          %152 = vsyncadd [#allocation6], 0
          %s153 = sshll.u32 %s1, 4
          %s154 = int_to_ptr.hbm [resolvable:$true] %s153
          %s155 = sshll.u32 [#allocation5], 4
          %s156 = int_to_ptr.vmem [resolvable:$true] %s155
          %161 = dma.hbm_to_vmem [thread:$0]  %s154, 2048, %s156, [#allocation6], 128, 128, 8
        $region16: #{tpu_custom_call.1} parent=11 // pred_fallthru
          _
        // Predicated region
        $region17: #{tpu_custom_call.1} parent=11 // pred_check
          %p162 = pneg %p86
        $region18: #{tpu_custom_call.1} parent=11 // pred_check_branch
          %164 = sbr.rel (%p162) target = $region20
        $region19: #{tpu_custom_call.1} parent=11 // pred_region
          %166 = vsyncadd [#allocation6], 0
          %s167 = sshll.u32 %s2, 4
          %s168 = int_to_ptr.hbm [resolvable:$true] %s167
          %s169 = sshll.u32 [#allocation7], 4
          %s170 = int_to_ptr.vmem [resolvable:$true] %s169
          %175 = dma.hbm_to_vmem [thread:$0]  %s168, 2048, %s170, [#allocation6], 128, 128, 8
        $region20: #{tpu_custom_call.1} parent=11 // pred_fallthru
          _
        // Predicated region
        $region21: #{tpu_custom_call.1} parent=11 // pred_check
          %p176 = pneg %p107
        $region22: #{tpu_custom_call.1} parent=11 // pred_check_branch
          %178 = sbr.rel (%p176) target = $region24
        $region23: #{tpu_custom_call.1} parent=11 // pred_region
          %180 = vsyncadd [#allocation9], 0
          %s182 = sshll.u32 %s3, 4
          %s183 = int_to_ptr.hbm [resolvable:$true] %s182
          %s184 = sshll.u32 [#allocation8], 4
          %s185 = int_to_ptr.vmem [resolvable:$true] %s184
          %187 = dma.hbm_to_vmem [thread:$0]  %s183, 64, %s185, [#allocation9]
        $region24: #{tpu_custom_call.1} parent=11 // pred_fallthru
          _
      $region12: #{tpu_custom_call.1} parent=5 // pred_fallthru
        _
      %p188 = scmp.lt.s32.totalorder %s18, 2
      // Predicated region
      $region25: #{tpu_custom_call.1} parent=5 // pred_check
        %p189 = pneg %p188
      $region26: #{tpu_custom_call.1} parent=5 // pred_check_branch
        %191 = sbr.rel (%p189) target = $region28
      $region27: #{tpu_custom_call.1} parent=5 // pred_region
        // Predicated region
        $region29: #{tpu_custom_call.1} parent=27 // pred_check
          %p192 = pneg %p38
        $region30: #{tpu_custom_call.1} parent=27 // pred_check_branch
          %194 = sbr.rel (%p192) target = $region32
        $region31: #{tpu_custom_call.1} parent=27 // pred_region
          %s195 = sand.u32 %s28, 1
          %s196 = scalar_lea.sflag [#allocation3], %s195
          %s197 = sand.u32 %s28, 1
          %s198 = smul.addr %s197, 8
          %s199 = scalar_lea.vmem [#allocation2], %s198
          %201 = vsyncadd %s196, 0
          %s202 = smul.addr %s18, 8
          %s203 = scalar_lea.hbm %s0, %s202
          %s205 = sshll.u32 %s203, 4
          %s206 = int_to_ptr.hbm [resolvable:$true] %s205
          %s207 = sshll.u32 %s199, 4
          %s208 = int_to_ptr.vmem [resolvable:$true] %s207
          %210 = dma.hbm_to_vmem [thread:$0]  %s206, 128, %s208, %s196
        $region32: #{tpu_custom_call.1} parent=27 // pred_fallthru
          _
      $region28: #{tpu_custom_call.1} parent=5 // pred_fallthru
        _
      %p211 = scmp.le.s32.totalorder 1, %s18
      %p212 = scmp.lt.s32.totalorder %s18, 3
      %p213 = pnand %p211, %p212
      %p214 = pneg %p213
      // Predicated region
      $region33: #{tpu_custom_call.1} parent=5 // pred_check
        _
      $region34: #{tpu_custom_call.1} parent=5 // pred_check_branch
        %216 = sbr.rel (%p213) target = $region36
      $region35: #{tpu_custom_call.1} parent=5 // pred_region
        %s217 = ssub.s32 %s18, 1
        %s218 = sand.u32 %s31, 1
        %s219 = scalar_lea.sflag [#allocation3], %s218
        %s220 = sand.u32 %s31, 1
        %s221 = smul.addr %s220, 8
        %s222 = scalar_lea.vmem [#allocation2], %s221
        // Predicated region
        $region37: #{tpu_custom_call.1} parent=35 // pred_check
          %p223 = pneg %p44
        $region38: #{tpu_custom_call.1} parent=35 // pred_check_branch
          %225 = sbr.rel (%p223) target = $region40
        $region39: #{tpu_custom_call.1} parent=35 // pred_region
          %227 = dma.done %s219, 128
        $region40: #{tpu_custom_call.1} parent=35 // pred_fallthru
          _
        // Predicated region
        $region41: #{tpu_custom_call.1} parent=35 // pred_check
          %p228 = pneg %p65
        $region42: #{tpu_custom_call.1} parent=35 // pred_check_branch
          %230 = sbr.rel (%p228) target = $region44
        $region43: #{tpu_custom_call.1} parent=35 // pred_region
          %232 = dma.done [#allocation6], 2048
        $region44: #{tpu_custom_call.1} parent=35 // pred_fallthru
          _
        // Predicated region
        $region45: #{tpu_custom_call.1} parent=35 // pred_check
          %p233 = pneg %p86
        $region46: #{tpu_custom_call.1} parent=35 // pred_check_branch
          %235 = sbr.rel (%p233) target = $region48
        $region47: #{tpu_custom_call.1} parent=35 // pred_region
          %237 = dma.done [#allocation6], 2048
        $region48: #{tpu_custom_call.1} parent=35 // pred_fallthru
          _
        // Predicated region
        $region49: #{tpu_custom_call.1} parent=35 // pred_check
          %p238 = pneg %p107
        $region50: #{tpu_custom_call.1} parent=35 // pred_check_branch
          %240 = sbr.rel (%p238) target = $region52
        $region51: #{tpu_custom_call.1} parent=35 // pred_region
          %242 = dma.done [#allocation9], 64
        $region52: #{tpu_custom_call.1} parent=35 // pred_fallthru
          _
        %s243 = sand.u32 %s31, 1
        %s244 = scalar_lea.sflag [#allocation3], %s243
        %s245 = sand.u32 %s31, 1
        %s246 = smul.addr %s245, 8
        %s247 = scalar_lea.vmem [#allocation2], %s246
        %p248 = pneg %p44
        %p249 = pneg %p41
        %p250 = pneg %p65
        %p251 = pneg %p62
        %p252 = pneg %p86
        %p253 = pneg %p83
        %p254 = pneg %p107
        %p255 = pneg %p104
        %p256 = pneg %p133
        %p257 = pneg %p130
        %s258 = sand.u32 %s120, 1
        %s259 = scalar_lea.sflag [#allocation4], %s258
        %s260 = sand.u32 %s120, 1
        %s261 = smul.addr %s260, 8
        %s262 = scalar_lea.vmem [#allocation10], %s261
        %v263 = vld [vmem:[%s222] sm:$0xff]
        %v264 = vld [vmem:[#allocation8] sm:$0x1]
        %v265 = vld [vmem:[#allocation5] sm:$0xff]
        %v266 = vld [vmem:[#allocation5 + $0x8] sm:$0xff]
        %v267 = vld [vmem:[#allocation5 + $0x10] sm:$0xff]
        %v268 = vld [vmem:[#allocation5 + $0x18] sm:$0xff]
        %v269 = vld [vmem:[#allocation5 + $0x20] sm:$0xff]
        %v270 = vld [vmem:[#allocation5 + $0x28] sm:$0xff]
        %v271 = vld [vmem:[#allocation5 + $0x30] sm:$0xff]
        %v272 = vld [vmem:[#allocation5 + $0x38] sm:$0xff]
        %v273 = vld [vmem:[#allocation5 + $0x40] sm:$0xff]
        %v274 = vld [vmem:[#allocation5 + $0x48] sm:$0xff]
        %v275 = vld [vmem:[#allocation5 + $0x50] sm:$0xff]
        %v276 = vld [vmem:[#allocation5 + $0x58] sm:$0xff]
        %v277 = vld [vmem:[#allocation5 + $0x60] sm:$0xff]
        %v278 = vld [vmem:[#allocation5 + $0x68] sm:$0xff]
        %v279 = vld [vmem:[#allocation5 + $0x70] sm:$0xff]
        %v280 = vld [vmem:[#allocation5 + $0x78] sm:$0xff]
        %v281 = vperm.slane %v264, 0
        %282 = vmatpush.msra.mxu0 %v280
        %283 = vmatpush.msra.mxu0 %v279
        %284 = vmatpush.msra.mxu0 %v278
        %285 = vmatpush.msra.mxu0 %v277
        %286 = vmatpush.msra.mxu0 %v276
        %287 = vmatpush.msra.mxu0 %v275
        %288 = vmatpush.msra.mxu0 %v274
        %289 = vmatpush.msra.mxu0 %v273
        %290 = vmatpush.msra.mxu0 %v272
        %291 = vmatpush.msra.mxu0 %v271
        %292 = vmatpush.msra.mxu0 %v270
        %293 = vmatpush.msra.mxu0 %v269
        %294 = vmatpush.msra.mxu0 %v268
        %295 = vmatpush.msra.mxu0 %v267
        %296 = vmatpush.msra.mxu0 %v266
        %297 = vmatpush.msra.mxu0 %v265
        %298 = vmatmul.f32.gmra.mxu0 %v263
        %v299 = vpop.f32.mrf.mxu0
        %v300 = vadd.f32 %v281, %v299
        %301 = vdwg.mxu0
        %v302 = vxor.u32 %v300, 2147483648
        %v303 = vmul.f32 %v302, 1.442695
        %v304 = vpow.pop %v303
        %v305 = vadd.f32 %v304, 1.0
        %v306 = vrcp.pop %v305
        %v307 = vmul.f32 %v305, %v306
        %v308 = vsub.f32 1.0, %v307
        %v309 = vmul.f32 %v306, %v308
        %v310 = vadd.f32 %v306, %v309
        %vm311 = vweird.f32 %v305
        %vm312 = vweird.f32 %v306
        %vm313 = vmor %vm311, %vm312
        %v314 = vsel %vm313, %v306, %v310
        %v315 = vand.u32 2147483647, %v305
        %vm316 = vcmp.eq.f32.partialorder %v315, 8.507059e+37
        %v317 = vand.u32 %v305, 2147483648
        %v318 = vor.u32 1.1754944e-38, %v317
        %v319 = vsel %vm316, %v318, %v314
        %v320 = vmul.f32 1.0, %v319
        %v321 = vmul.f32 %v300, %v320
        %v322 = vld [vmem:[#allocation7] sm:$0xff]
        %v323 = vld [vmem:[#allocation7 + $0x8] sm:$0xff]
        %v324 = vld [vmem:[#allocation7 + $0x10] sm:$0xff]
        %v325 = vld [vmem:[#allocation7 + $0x18] sm:$0xff]
        %v326 = vld [vmem:[#allocation7 + $0x20] sm:$0xff]
        %v327 = vld [vmem:[#allocation7 + $0x28] sm:$0xff]
        %v328 = vld [vmem:[#allocation7 + $0x30] sm:$0xff]
        %v329 = vld [vmem:[#allocation7 + $0x38] sm:$0xff]
        %v330 = vld [vmem:[#allocation7 + $0x40] sm:$0xff]
        %v331 = vld [vmem:[#allocation7 + $0x48] sm:$0xff]
        %v332 = vld [vmem:[#allocation7 + $0x50] sm:$0xff]
        %v333 = vld [vmem:[#allocation7 + $0x58] sm:$0xff]
        %v334 = vld [vmem:[#allocation7 + $0x60] sm:$0xff]
        %v335 = vld [vmem:[#allocation7 + $0x68] sm:$0xff]
        %v336 = vld [vmem:[#allocation7 + $0x70] sm:$0xff]
        %v337 = vld [vmem:[#allocation7 + $0x78] sm:$0xff]
        %v338 = vld [vmem:[#allocation8] sm:$0xf]
        %v339 = vperm.slane %v338, 1
        %340 = vmatpush.msra.mxu0 %v337
        %341 = vmatpush.msra.mxu0 %v336
        %342 = vmatpush.msra.mxu0 %v335
        %343 = vmatpush.msra.mxu0 %v334
        %344 = vmatpush.msra.mxu0 %v333
        %345 = vmatpush.msra.mxu0 %v332
        %346 = vmatpush.msra.mxu0 %v331
        %347 = vmatpush.msra.mxu0 %v330
        %348 = vmatpush.msra.mxu0 %v329
        %349 = vmatpush.msra.mxu0 %v328
        %350 = vmatpush.msra.mxu0 %v327
        %351 = vmatpush.msra.mxu0 %v326
        %352 = vmatpush.msra.mxu0 %v325
        %353 = vmatpush.msra.mxu0 %v324
        %354 = vmatpush.msra.mxu0 %v323
        %355 = vmatpush.msra.mxu0 %v322
        %356 = vmatmul.f32.gmra.mxu0 %v321
        %v357 = vpop.f32.mrf.mxu0
        %v358 = vadd.f32 %v339, %v357
        %359 = vdwg.mxu0
        %360 = vadd.xlane.f32.xlu0 %v358
        %v361 = vpop.xlane.xlu0 %360
        %v362 = vmul.f32 %v358, %v358
        %363 = vadd.xlane.f32.xlu0 %v362
        %v364 = vpop.xlane.xlu0 %363
        %v365 = vmul.f32 %v361, 0.03125
        %v366 = vmul.f32 %v364, 0.03125
        %v367 = vmul.f32 %v365, %v365
        %v368 = vsub.f32 %v366, %v367
        %v369 = vmax.f32 %v368, 0.0
        %v370 = vsub.f32 %v358, %v365
        %v371 = vadd.f32 %v369, 1e-06
        %v372 = vrsqrt.pop %v371
        %v373 = vmul.f32 %v372, %v371
        %v374 = vmul.f32 %v373, %v372
        %v375 = vmul.f32 0.5, %v374
        %v376 = vsub.f32 1.5, %v375
        %v377 = vmul.f32 %v372, %v376
        %vm378 = vweird.f32 %v371
        %vm379 = vweird.f32 %v372
        %vm380 = vmor %vm378, %vm379
        %v381 = vsel %vm380, %v372, %v377
        %v382 = vmul.f32 %v370, %v381
        %v383 = vperm.slane %v338, 2
        %v384 = vmul.f32 %v382, %v383
        %v385 = vperm.slane %v338, 3
        %v386 = vadd.f32 %v384, %v385
        %387 = vst [vmem:[%s262] sm:$0xff] %v386
        %s388 = sand.u32 %s120, 1
        %s389 = scalar_lea.sflag [#allocation4], %s388
        %s390 = sand.u32 %s120, 1
        %s391 = smul.addr %s390, 8
        %s392 = scalar_lea.vmem [#allocation10], %s391
        // Predicated region
        $region53: #{tpu_custom_call.1} parent=35 // pred_check
          %p393 = pneg %p130
        $region54: #{tpu_custom_call.1} parent=35 // pred_check_branch
          %395 = sbr.rel (%p393) target = $region56
        $region55: #{tpu_custom_call.1} parent=35 // pred_region
          %397 = vsyncadd %s389, 0
          %s398 = smul.addr %s23, 8
          %s399 = scalar_lea.hbm %s4, %s398
          %s401 = sshll.u32 %s392, 4
          %s402 = int_to_ptr.vmem [resolvable:$true] %s401
          %s403 = sshll.u32 %s399, 4
          %s404 = int_to_ptr.hbm [resolvable:$true] %s403
          %406 = dma.vmem_to_hbm [thread:$0]  %s402, 128, %s404, %s389
        $region56: #{tpu_custom_call.1} parent=35 // pred_fallthru
          _
      $region36: #{tpu_custom_call.1} parent=5 // pred_fallthru
        _
      %p407 = scmp.le.s32.totalorder 2, %s18
      // Predicated region
      $region57: #{tpu_custom_call.1} parent=5 // pred_check
        %p408 = pneg %p407
      $region58: #{tpu_custom_call.1} parent=5 // pred_check_branch
        %410 = sbr.rel (%p408) target = $region60
      $region59: #{tpu_custom_call.1} parent=5 // pred_region
        %s411 = ssub.s32 %s18, 2
        // Predicated region
        $region61: #{tpu_custom_call.1} parent=59 // pred_check
          %p412 = pneg %p136
        $region62: #{tpu_custom_call.1} parent=59 // pred_check_branch
          %414 = sbr.rel (%p412) target = $region64
        $region63: #{tpu_custom_call.1} parent=59 // pred_region
          %s415 = sand.u32 %s121, 1
          %s416 = scalar_lea.sflag [#allocation4], %s415
          %s417 = sand.u32 %s121, 1
          %s418 = smul.addr %s417, 8
          %s419 = scalar_lea.vmem [#allocation10], %s418
          %421 = dma.done %s416, 128
        $region64: #{tpu_custom_call.1} parent=59 // pred_fallthru
          _
      $region60: #{tpu_custom_call.1} parent=5 // pred_fallthru
        _
    $region6: #{tpu_custom_call.1} parent=1 // loop_footer
      %s22 = sadd.s32 1, %s18
    $region7: #{tpu_custom_call.1} parent=1 // loop_footer_branch
      %17 = sbr.rel target = $region3
    $region8: #{tpu_custom_call.1} parent=1 // loop_exit
      _
    %422 = vsyncpa [#allocation3], 1
    %s423 = scalar_lea.sflag [#allocation3], 1
    %424 = vsyncpa %s423, 1
    %425 = vsyncpa [#allocation6], 1
    %426 = vsyncpa [#allocation9], 1
    %427 = vsyncpa [#allocation4], 1
    %s428 = scalar_lea.sflag [#allocation4], 1
    %429 = vsyncpa %s428, 1

</llo_original>
